<compile_context>
chip_gen: v7x
topology: tpu7x:2x2x1
jax: 0.10.0
libtpu: 0.0.40
codegen_flags: <defaults>
</compile_context>

<pallas_src>
import jax
import jax.numpy as jnp
from jax.experimental import pallas as pl
from jax.experimental.pallas import tpu as pltpu


# TODO(synk): GCNConv / TopKPooling / global mean+max pooling of GraphUNets are
# external torch_geometric modules; only the GUnpool scatter is a Pallas kernel.


def _round_up(x, m):
    return ((x + m - 1) // m) * m


def _cdiv(a, b):
    return (a + b - 1) // b


def _default_tile():
    try:
        kind = jax.devices()[0].device_kind.lower()
        if "v7" in kind:
            return 256          # 64 MiB/TC VMEM -> keep tiles modest
    except Exception:
        pass
    return 512                  # v5e / v6e: 128 MiB VMEM, amortize step overhead


# ----------------------------- kernel -------------------------------------- #

def _gunpool_kernel(kstart_ref, hits_ref, idxs_ref, xl_ref, out_ref):
    # kstart_ref, hits_ref: (n_row_tiles,) int32 in SMEM (scalar prefetch)
    # idxs_ref: (1, TK)   int32     VMEM  -- one k-tile of (sorted, padded) idxs
    # xl_ref:   (TK, C)   xl.dtype  VMEM  -- matching k-tile of xl
    # out_ref:  (TR, C)   xl.dtype  VMEM  -- one output row tile (resident over k)
    i = pl.program_id(0)          # output row tile     ("parallel")
    k = pl.program_id(1)          # k-step over xl tiles ("arbitrary", last)

    @pl.when(k == 0)
    def _init():
        out_ref[...] = jnp.zeros_like(out_ref)

    @pl.when(k < hits_ref[i])
    def _accumulate():
        tr = out_ref.shape[0]
        row_ids = i * tr + jax.lax.broadcasted_iota(jnp.int32, (tr, 1), 0)
        # one-hot scatter matrix (TR, TK): 1 where idxs[j] == global row id.
        # padded idxs entries are -1 and never match.
        onehot = (row_ids == idxs_ref[...]).astype(xl_ref.dtype)
        # exact for 0/1 weights + unique indices, so accumulating in the output
        # dtype is bit-exact and no f32 scratch is needed.
        out_ref[...] += jnp.dot(
            onehot, xl_ref[...], preferred_element_type=jnp.float32
        ).astype(out_ref.dtype)


def _xl_index_map(i, k, kstart_ref, hits_ref):
    # Skipped steps repeat the previous block index so Pallas dedups the DMA.
    kk = jnp.where(k < hits_ref[i], k, 0)
    return (kstart_ref[i] + kk, 0)


def _idxs_index_map(i, k, kstart_ref, hits_ref):
    kk = jnp.where(k < hits_ref[i], k, 0)
    return (0, kstart_ref[i] + kk)


def _out_index_map(i, k, kstart_ref, hits_ref):
    return (i, 0)


# ----------------------------- wrapper -------------------------------------- #

def gunpool(xl, idxs, up_shape, *, row_tile=None, k_tile=None):
    """Pallas implementation of GUnpool.forward(xl, idxs, up_shape)."""
    n_down, c = xl.shape
    n_up = int(up_shape[0])
    out_dtype = xl.dtype
    itemsize = jnp.dtype(out_dtype).itemsize
    sub = max(8, 32 // itemsize)          # sublane packing: 8 f32, 16 bf16, 32 int8

    base = _default_tile()
    row_tile = base if row_tile is None else row_tile
    k_tile = base if k_tile is None else k_tile

    # Output row tile.
    tr = min(_round_up(row_tile, sub), _round_up(n_up, sub))
    # Keep >= 2 row tiles when there are enough rows (v7x megacore sharding).
    if n_up >= 256 and _cdiv(n_up, tr) < 2:
        tr = _round_up(_cdiv(n_up, 2), sub)
    gr = _cdiv(n_up, tr)

    # K tile: multiple of 128 (lane-dense idxs tile) and >= tr so each sorted
    # output row tile overlaps at most 2 k-tiles.
    tk_cap = max(_round_up(k_tile, 128), _round_up(tr, 128))

    idxs32 = idxs.astype(jnp.int32)

    if n_down <= tk_cap:
        # ---- single K tile: xl / idxs fully VMEM-resident, DMA'd once ----
        tk = n_down
        gk = 1
        n_down_pad = n_down
        xl_s = xl
        idxs_p = idxs32.reshape(1, n_down)
        kstart = jnp.zeros((gr,), jnp.int32)
        hits = jnp.ones((gr,), jnp.int32)
    else:
        # ---- multi K tile: sort indices -> tile-skipping via scalar prefetch
        tk = tk_cap
        gk = 2
        n_down_pad = _round_up(n_down, tk)
        n_kt = n_down_pad // tk
        pad = n_down_pad - n_down

        order = jnp.argsort(idxs32)
        idxs_sorted = jnp.take(idxs32, order)
        # fuse the row padding into the gather (padding rows reuse row 0 of xl;
        # their idx is the -1 sentinel so they never match).
        order_p = jnp.concatenate([order, jnp.zeros((pad,), order.dtype)])
        xl_s = jnp.take(xl, order_p, axis=0)
        idxs_p = jnp.concatenate(
            [idxs_sorted, jnp.full((pad,), -1, jnp.int32)]
        ).reshape(1, n_down_pad)

        # Per output row tile: first/last sorted position that lands in it.
        bounds = jnp.arange(gr + 1, dtype=jnp.int32) * tr
        pos = jnp.searchsorted(idxs_sorted, bounds).astype(jnp.int32)
        lo, hi = pos[:-1], pos[1:]
        k_first = lo // tk
        k_last = jnp.minimum((hi - 1) // tk, n_kt - 1)
        # clamp so kstart + 1 is always a valid block index; if clamped, the
        # extra leading tile contains no matches (sorted), so it is harmless.
        kstart = jnp.clip(k_first, 0, n_kt - 2).astype(jnp.int32)
        hits = jnp.where(hi > lo, k_last - kstart + 1, 0).astype(jnp.int32)

    grid = (gr, gk)

    cost = pl.CostEstimate(
        flops=2 * gr * gk * tr * tk * c,
        transcendentals=0,
        bytes_accessed=(n_down_pad * c + n_up * c) * itemsize + n_down_pad * 4,
    )
    # double-buffered xl + idxs + out blocks, with generous headroom; never
    # below the 32 MiB default scoped limit, never above 100 MiB.
    vmem_bytes = 2 * (tk * c * itemsize + tr * c * itemsize + tk * 4)
    vmem_limit = int(min(max(4 * vmem_bytes, 32 * 1024 * 1024), 100 * 1024 * 1024))

    out = pl.pallas_call(
        _gunpool_kernel,
        out_shape=jax.ShapeDtypeStruct((n_up, c), out_dtype),
        grid_spec=pltpu.PrefetchScalarGridSpec(
            num_scalar_prefetch=2,
            grid=grid,
            in_specs=[
                pl.BlockSpec((1, tk), _idxs_index_map),   # idxs k-tile
                pl.BlockSpec((tk, c), _xl_index_map),     # xl   k-tile
            ],
            out_specs=pl.BlockSpec((tr, c), _out_index_map),
        ),
        compiler_params=pltpu.CompilerParams(
            dimension_semantics=("parallel", "arbitrary"),
            vmem_limit_bytes=vmem_limit,
        ),
        cost_estimate=cost,
    )(kstart, hits, idxs_p, xl_s)
    return out


# ----------------------------- tests ---------------------------------------- #

def _reference(xl, idxs, up_shape):
    out = jnp.zeros((int(up_shape[0]), xl.shape[1]), dtype=xl.dtype)
    return out.at[idxs].set(xl)


if __name__ == "__main__":
    key = jax.random.PRNGKey(0)

    # --- test 1: small shapes consistent with the module (C=32 level), f32 ---
    k1, k2 = jax.random.split(key)
    n_down, c, n_up = 8, 32, 16
    xl = jax.random.normal(k1, (n_down, c), dtype=jnp.float32)
    idxs = jax.random.permutation(k2, n_up)[:n_down].astype(jnp.int32)
    out = gunpool(xl, idxs, (n_up, c))
    jax.block_until_ready(out)
    ref = _reference(xl, idxs, (n_up, c))
    assert out.shape == (n_up, c) and out.dtype == xl.dtype
    assert jnp.allclose(out, ref, atol=1e-6), "mismatch vs reference (test 1)"

    # --- test 2: deepest unpool level (C=256), bf16, ragged rows, 2 row tiles ---
    k3, k4 = jax.random.split(k1)
    n_down2, c2, n_up2 = 40, 256, 300
    xl2 = jax.random.normal(k3, (n_down2, c2), dtype=jnp.float32).astype(jnp.bfloat16)
    idxs2 = jax.random.permutation(k4, n_up2)[:n_down2].astype(jnp.int32)
    out2 = gunpool(xl2, idxs2, (n_up2, c2))
    jax.block_until_ready(out2)
    ref2 = _reference(xl2, idxs2, (n_up2, c2))
    assert out2.shape == (n_up2, c2) and out2.dtype == jnp.bfloat16
    assert jnp.array_equal(out2, ref2), "mismatch vs reference (test 2)"

    # --- test 3: force the multi-K-tile sorted/tile-skipping path (small tiles) ---
    k5, k6 = jax.random.split(k3)
    n_down3, c3, n_up3 = 300, 64, 600
    xl3 = jax.random.normal(k5, (n_down3, c3), dtype=jnp.float32)
    idxs3 = jax.random.permutation(k6, n_up3)[:n_down3].astype(jnp.int32)
    out3 = gunpool(xl3, idxs3, (n_up3, c3), row_tile=64, k_tile=128)
    jax.block_until_ready(out3)
    ref3 = _reference(xl3, idxs3, (n_up3, c3))
    assert out3.shape == (n_up3, c3)
    assert jnp.allclose(out3, ref3, atol=1e-6), "mismatch vs reference (test 3)"

    print("KERNEL_OK")
</pallas_src>

<mosaic_0001>
module attributes {stable_mosaic.version = 11 : i64} {
  func.func @_gunpool_kernel(%arg0: i32, %arg1: i32, %arg2: memref<1xi32, #tpu.memory_space<smem>>, %arg3: memref<1xi32, #tpu.memory_space<smem>>, %arg4: memref<1x8xi32, #tpu.memory_space<vmem>>, %arg5: memref<8x32xf32, #tpu.memory_space<vmem>>, %arg6: memref<16x32xf32, #tpu.memory_space<vmem>>) attributes {dimension_semantics = [#tpu.dimension_semantics<parallel>, #tpu.dimension_semantics<arbitrary>], iteration_bounds = array<i64: 1, 1>, scalar_prefetch = 2 : i64, scratch_operands = 0 : i64, tpu.core_type = #tpu.core_type<tc>, window_params = [{transform_indices = @transform_0, window_bounds = array<i64: 1, 8>}, {transform_indices = @transform_1, window_bounds = array<i64: 8, 32>}, {transform_indices = @transform_2, window_bounds = array<i64: 16, 32>}]} {
    %c0_i32 = arith.constant 0 : i32
    %0 = arith.cmpi eq, %arg1, %c0_i32 : i32
    %1 = arith.extui %0 : i1 to i32
    %c0_i32_0 = arith.constant 0 : i32
    %2 = arith.cmpi ne, %1, %c0_i32_0 : i32
    scf.if %2 {
      %cst = arith.constant 0.000000e+00 : f32
      %8 = vector.broadcast %cst : f32 to vector<16x32xf32>
      %c0 = arith.constant 0 : index
      %c0_2 = arith.constant 0 : index
      %9 = vector.load %arg6[%c0, %c0_2] : memref<16x32xf32, #tpu.memory_space<vmem>>, vector<16x32xf32>
      tpu.vector_store %arg6[%c0, %c0_2], %8 {strides = array<i32>} : memref<16x32xf32, #tpu.memory_space<vmem>>, vector<16x32xf32>,
    } else {
    }
    %3 = arith.index_cast %arg0 : i32 to index
    %4 = memref.load %arg3[%3] : memref<1xi32, #tpu.memory_space<smem>>
    %5 = arith.cmpi slt, %arg1, %4 : i32
    %6 = arith.extui %5 : i1 to i32
    %c0_i32_1 = arith.constant 0 : i32
    %7 = arith.cmpi ne, %6, %c0_i32_1 : i32
    scf.if %7 {
      %c16_i32 = arith.constant 16 : i32
      %8 = arith.muli %arg0, %c16_i32 : i32
      %9 = tpu.iota {dimensions = array<i32: 0>} : vector<16x1xi32>
      %10 = vector.broadcast %8 : i32 to vector<16x1xi32>
      %11 = arith.addi %10, %9 : vector<16x1xi32>
      %c0 = arith.constant 0 : index
      %c0_2 = arith.constant 0 : index
      %12 = vector.load %arg4[%c0, %c0_2] : memref<1x8xi32, #tpu.memory_space<vmem>>, vector<1x8xi32>
      %13 = vector.broadcast %11 : vector<16x1xi32> to vector<16x8xi32>
      %14 = vector.broadcast %12 : vector<1x8xi32> to vector<16x8xi32>
      %15 = arith.cmpi eq, %13, %14 : vector<16x8xi32>
      %16 = arith.extui %15 : vector<16x8xi1> to vector<16x8xi32>
      %17 = arith.sitofp %16 : vector<16x8xi32> to vector<16x8xf32>
      %c0_3 = arith.constant 0 : index
      %c0_4 = arith.constant 0 : index
      %18 = vector.load %arg6[%c0_3, %c0_4] : memref<16x32xf32, #tpu.memory_space<vmem>>, vector<16x32xf32>
      %c0_5 = arith.constant 0 : index
      %c0_6 = arith.constant 0 : index
      %19 = vector.load %arg5[%c0_5, %c0_6] : memref<8x32xf32, #tpu.memory_space<vmem>>, vector<8x32xf32>
      %cst = arith.constant dense<0.000000e+00> : vector<16x32xf32>
      %20 = tpu.matmul %17, %19, %cst {dimension_numbers = #tpu.dot_dimension_numbers<[1], [0], [0], [1], [0, 0, 1, 1], [], []>} : vector<16x8xf32>, vector<8x32xf32>, vector<16x32xf32> -> vector<16x32xf32>
      %21 = arith.addf %18, %20 : vector<16x32xf32>
      %c0_7 = arith.constant 0 : index
      %c0_8 = arith.constant 0 : index
      %22 = vector.load %arg6[%c0_7, %c0_8] : memref<16x32xf32, #tpu.memory_space<vmem>>, vector<16x32xf32>
      tpu.vector_store %arg6[%c0_7, %c0_8], %21 {strides = array<i32>} : memref<16x32xf32, #tpu.memory_space<vmem>>, vector<16x32xf32>,
    } else {
    }
    return
  }
  func.func @transform_0(%arg0: i32, %arg1: i32, %arg2: memref<1xi32, #tpu.memory_space<smem>>, %arg3: memref<1xi32, #tpu.memory_space<smem>>) -> (i32, i32) {
    %0 = arith.index_cast %arg0 : i32 to index
    %1 = memref.load %arg3[%0] : memref<1xi32, #tpu.memory_space<smem>>
    %2 = arith.cmpi slt, %arg1, %1 : i32
    %c0_i32 = arith.constant 0 : i32
    %3 = arith.select %2, %arg1, %c0_i32 : i32
    %4 = arith.index_cast %arg0 : i32 to index
    %5 = memref.load %arg2[%4] : memref<1xi32, #tpu.memory_space<smem>>
    %6 = arith.addi %5, %3 : i32
    %c0_i32_0 = arith.constant 0 : i32
    %c0_i32_1 = arith.constant 0 : i32
    return %c0_i32_0, %6 : i32, i32
  }
  func.func @transform_1(%arg0: i32, %arg1: i32, %arg2: memref<1xi32, #tpu.memory_space<smem>>, %arg3: memref<1xi32, #tpu.memory_space<smem>>) -> (i32, i32) {
    %0 = arith.index_cast %arg0 : i32 to index
    %1 = memref.load %arg3[%0] : memref<1xi32, #tpu.memory_space<smem>>
    %2 = arith.cmpi slt, %arg1, %1 : i32
    %c0_i32 = arith.constant 0 : i32
    %3 = arith.select %2, %arg1, %c0_i32 : i32
    %4 = arith.index_cast %arg0 : i32 to index
    %5 = memref.load %arg2[%4] : memref<1xi32, #tpu.memory_space<smem>>
    %6 = arith.addi %5, %3 : i32
    %c0_i32_0 = arith.constant 0 : i32
    %c0_i32_1 = arith.constant 0 : i32
    return %6, %c0_i32_0 : i32, i32
  }
  func.func @transform_2(%arg0: i32, %arg1: i32, %arg2: memref<1xi32, #tpu.memory_space<smem>>, %arg3: memref<1xi32, #tpu.memory_space<smem>>) -> (i32, i32) {
    %c0_i32 = arith.constant 0 : i32
    %c0_i32_0 = arith.constant 0 : i32
    return %arg0, %c0_i32 : i32, i32
  }
}

</mosaic_0001>

<llo_original>
// kernel: tpu_custom_call.1
$region0: #{tpu_custom_call.1}
  #allocation0 [shape = 'u32[]', space=smem, size = 0x4, offset = 0x4, fixed_abs, tag = 'smem constant byte address 0x4 - core index']
  #allocation1 [shape = 'u32[144,128]{1,0:T(1,128)}', space=vmem, size = 0x12000, scoped, tag = 'internal scratch']
  #allocation2 [shape = 's32[1]{0}', space=sflag, size = 0x4, scoped, tag = 'scoped memory for tpu_custom_call.1']
  #allocation3 [shape = 's32[1]{0:T(128)S(6)}', space=smem, size = 0x200, scoped, tag = 'prefetched SMEM operand 0']
  #allocation4 [shape = 's32[1]{0:T(128)S(6)}', space=smem, size = 0x200, scoped, tag = 'prefetched SMEM operand 1']
  %s0 = inlined_call_operand.<no memory space> [shape: s32[1], index: 0, kind: input, shape index: {}]
  %s1 = inlined_call_operand.<no memory space> [shape: s32[1], index: 1, kind: input, shape index: {}]
  %s2 = inlined_call_operand.vmem [shape: s32[1,8], index: 2, kind: input, shape index: {}]
  %s3 = inlined_call_operand.vmem [shape: f32[8,32], index: 3, kind: input, shape index: {}]
  %s4 = inlined_call_operand.hbm [shape: f32[16,32], index: 4, kind: output, shape index: {}]
  %s5 = sld [smem:[#allocation0]]
  $region26: #{tpu_custom_call.1} parent=0
    _
  %s7 = ssub.s32 1, %s5
  %s8 = scalar_select 0, %s7, %s5
  %9 = sst [smem:[#allocation3]] %s0
  %10 = sst [smem:[#allocation4]] %s1
  $region1: #{tpu_custom_call.1} parent=0
    #allocation5 [shape = 'u8[8192]{0}', space=vmem, size = 0x2000, scoped, tag = 'output window, operand 0, single buffered']
    #allocation6 [shape = 's32[1]{0}', space=sflag, size = 0x4, scoped, tag = 'scoped memory for tpu_custom_call.1']
    %11 = vsyncpa [#allocation6], 0
    // Predicated region
    $region2: #{tpu_custom_call.1} parent=1 // pred_check
      _
    $region3: #{tpu_custom_call.1} parent=1 // pred_check_branch
      %13 = sbr.rel (0) target = $region5
    $region4: #{tpu_custom_call.1} parent=1 // pred_region
      %s14 = sld [smem:[#allocation4]]
      %p15 = scmp.lt.s32.totalorder 0, %s14
      %s16 = scalar_select %p15, 0, 0
      %s17 = sld [smem:[#allocation3]]
      %s18 = sadd.s32 %s17, %s16
      %p19 = scmp.lt.s32.totalorder %s18, 0
      %s20 = scalar_select %p19, %s18, 0
      %s21 = scalar_lea.vmem %s2, %s20
      %s22 = sld [smem:[#allocation4]]
      %p23 = scmp.lt.s32.totalorder 0, %s22
      %s24 = scalar_select %p23, 0, 0
      %s25 = sld [smem:[#allocation3]]
      %s26 = sadd.s32 %s25, %s24
    $region5: #{tpu_custom_call.1} parent=1 // pred_fallthru
      _
    // Predicated region
    $region6: #{tpu_custom_call.1} parent=1 // pred_check
      _
    $region7: #{tpu_custom_call.1} parent=1 // pred_check_branch
      %28 = sbr.rel (0) target = $region9
    $region8: #{tpu_custom_call.1} parent=1 // pred_region
      %s29 = sld [smem:[#allocation4]]
      %p30 = scmp.lt.s32.totalorder 0, %s29
      %s31 = scalar_select %p30, 0, 0
      %s32 = sld [smem:[#allocation3]]
      %s33 = sadd.s32 %s32, %s31
      %p34 = scmp.lt.s32.totalorder %s33, 0
      %s35 = scalar_select %p34, %s33, 0
      %s36 = smul.addr %s35, 8
      %s37 = scalar_lea.vmem %s3, %s36
      %s38 = sld [smem:[#allocation4]]
      %p39 = scmp.lt.s32.totalorder 0, %s38
      %s40 = scalar_select %p39, 0, 0
      %s41 = sld [smem:[#allocation3]]
      %s42 = sadd.s32 %s41, %s40
    $region9: #{tpu_custom_call.1} parent=1 // pred_fallthru
      _
    %s43 = sld [smem:[#allocation4]]
    %p44 = scmp.lt.s32.totalorder 0, %s43
    %s45 = scalar_select %p44, 0, 0
    %s46 = sld [smem:[#allocation3]]
    %s47 = sadd.s32 %s46, %s45
    %p48 = scmp.lt.s32.totalorder %s47, 0
    %s49 = scalar_select %p48, %s47, 0
    %s50 = scalar_lea.vmem %s2, %s49
    %s51 = sld [smem:[#allocation4]]
    %p52 = scmp.lt.s32.totalorder 0, %s51
    %s53 = scalar_select %p52, 0, 0
    %s54 = sld [smem:[#allocation3]]
    %s55 = sadd.s32 %s54, %s53
    %p56 = scmp.lt.s32.totalorder %s55, 0
    %s57 = scalar_select %p56, %s55, 0
    %s58 = smul.addr %s57, 8
    %s59 = scalar_lea.vmem %s3, %s58
    %s60 = sld [smem:[#allocation4]]
    %p61 = scmp.lt.s32.totalorder 0, %s60
    %s62 = scalar_select %p61, 0, 0
    %s63 = sld [smem:[#allocation3]]
    %s64 = sadd.s32 %s63, %s62
    %p65 = scmp.lt.s32.totalorder %s64, 0
    %s66 = scalar_select %p65, %s64, 0
    %s67 = scalar_lea.vmem %s2, %s66
    %s68 = sld [smem:[#allocation4]]
    %p69 = scmp.lt.s32.totalorder 0, %s68
    %s70 = scalar_select %p69, 0, 0
    %s71 = sld [smem:[#allocation3]]
    %s72 = sadd.s32 %s71, %s70
    %s73 = sld [smem:[#allocation4]]
    %p74 = scmp.lt.s32.totalorder 0, %s73
    %s75 = scalar_select %p74, 0, 0
    %s76 = sld [smem:[#allocation3]]
    %s77 = sadd.s32 %s76, %s75
    %p78 = scmp.lt.s32.totalorder %s77, 0
    %s79 = scalar_select %p78, %s77, 0
    %s80 = smul.addr %s79, 8
    %s81 = scalar_lea.vmem %s3, %s80
    %s82 = sld [smem:[#allocation4]]
    %p83 = scmp.lt.s32.totalorder 0, %s82
    %s84 = scalar_select %p83, 0, 0
    %s85 = sld [smem:[#allocation3]]
    %s86 = sadd.s32 %s85, %s84
    %p87 = scmp.eq.s32.totalorder 0, 0
    // Predicated region
    $region10: #{tpu_custom_call.1} parent=1 // pred_check
      %p88 = pneg %p87
    $region11: #{tpu_custom_call.1} parent=1 // pred_check_branch
      %90 = sbr.rel (%p88) target = $region13
    $region12: #{tpu_custom_call.1} parent=1 // pred_region
      %vm91 = vcmask 261120
      %92 = vst.msk [vmem:[#allocation5] sm:$0xff] %vm91, 0.0
      %93 = vst.msk [vmem:[#allocation5 + $0x8] sm:$0xff] %vm91, 0.0
    $region13: #{tpu_custom_call.1} parent=1 // pred_fallthru
      _
    %s94 = sld [smem:[#allocation4]]
    %p95 = scmp.lt.s32.totalorder 0, %s94
    // Predicated region
    $region14: #{tpu_custom_call.1} parent=1 // pred_check
      %p96 = pneg %p95
    $region15: #{tpu_custom_call.1} parent=1 // pred_check_branch
      %98 = sbr.rel (%p96) target = $region17
    $region16: #{tpu_custom_call.1} parent=1 // pred_region
      %s99 = smul.u32 0, 16
      %v100 = vlaneseq
      %v101 = vshrl.u32 %v100, 7
      %v102 = vadd.s32 %v101, 8
      %v103 = vstv %s99
      %v104 = vadd.s32 %v103, %v101
      %v105 = vadd.s32 %v103, %v102
      %v106 = vld [vmem:[%s67] sm:$0x1]
      %v107 = vlaneseq
      %v108 = vshrl.u32 %v107, 7
      %v109 = vsub.s32 0, %v108
      %v110 = vrot.slane %v106, %v109
      %vm111 = vcmp.eq.s32.totalorder %v104, %v110
      %vm112 = vcmp.eq.s32.totalorder %v105, %v110
      %v113 = vsel %vm111, 1, 0
      %v114 = vsel %vm112, 1, 0
      %v115 = vcvt.s32.f32 %v113
      %v116 = vcvt.s32.f32 %v114
      %v117 = vld [vmem:[#allocation5] sm:$0xff]
      %v118 = vld [vmem:[#allocation5 + $0x8] sm:$0xff]
      %v119 = vld [vmem:[%s81] sm:$0xff]
      %vm120 = vcmask 64512
      %v122 = vsel %vm120, %v115, 0
      %v125 = vsel %vm120, %v116, 0
      %127 = vmatprep.subr.mxu0 0.0
      %128 = vmatpush1.msra.mxu0 %v119
      %129 = vmatprep.subr.mxu0 0.0
      %130 = vmatpush1.msra.mxu0 0.0
      %131 = vmatprep.subr.mxu0 0.0
      %132 = vmatpush1.msra.mxu0 0.0
      %133 = vmatprep.subr.mxu0 0.0
      %134 = vmatpush1.msra.mxu0 0.0
      %135 = vmatprep.subr.mxu0 0.0
      %136 = vmatpush1.msra.mxu0 0.0
      %137 = vmatprep.subr.mxu0 0.0
      %138 = vmatpush1.msra.mxu0 0.0
      %139 = vmatprep.subr.mxu0 0.0
      %140 = vmatpush1.msra.mxu0 0.0
      %141 = vmatprep.subr.mxu0 0.0
      %142 = vmatpush1.msra.mxu0 0.0
      %143 = vmatprep.subr.mxu0 0.0
      %144 = vmatpush1.msra.mxu0 0.0
      %145 = vmatprep.subr.mxu0 0.0
      %146 = vmatpush1.msra.mxu0 0.0
      %147 = vmatprep.subr.mxu0 0.0
      %148 = vmatpush1.msra.mxu0 0.0
      %149 = vmatprep.subr.mxu0 0.0
      %150 = vmatpush1.msra.mxu0 0.0
      %151 = vmatprep.subr.mxu0 0.0
      %152 = vmatpush1.msra.mxu0 0.0
      %153 = vmatprep.subr.mxu0 0.0
      %154 = vmatpush1.msra.mxu0 0.0
      %155 = vmatprep.subr.mxu0 0.0
      %156 = vmatpush1.msra.mxu0 0.0
      %157 = vmatprep.subr.mxu0 0.0
      %158 = vmatpush1.msra.mxu0 0.0
      %159 = vmatprep.subr.mxu0 0.0
      %160 = vmatpush1.msra.mxu0 0.0
      %161 = vmatprep.subr.mxu0 0.0
      %162 = vmatpush1.msra.mxu0 0.0
      %163 = vmatprep.subr.mxu0 0.0
      %164 = vmatpush1.msra.mxu0 0.0
      %165 = vmatprep.subr.mxu0 0.0
      %166 = vmatpush1.msra.mxu0 0.0
      %167 = vmatprep.subr.mxu0 0.0
      %168 = vmatpush1.msra.mxu0 0.0
      %169 = vmatprep.subr.mxu0 0.0
      %170 = vmatpush1.msra.mxu0 0.0
      %171 = vmatprep.subr.mxu0 0.0
      %172 = vmatpush1.msra.mxu0 0.0
      %173 = vmatprep.subr.mxu0 0.0
      %174 = vmatpush1.msra.mxu0 0.0
      %175 = vmatprep.subr.mxu0 0.0
      %176 = vmatpush1.msra.mxu0 0.0
      %177 = vmatprep.subr.mxu0 0.0
      %178 = vmatpush1.msra.mxu0 0.0
      %179 = vmatprep.subr.mxu0 0.0
      %180 = vmatpush1.msra.mxu0 0.0
      %181 = vmatprep.subr.mxu0 0.0
      %182 = vmatpush1.msra.mxu0 0.0
      %183 = vmatprep.subr.mxu0 0.0
      %184 = vmatpush1.msra.mxu0 0.0
      %185 = vmatprep.subr.mxu0 0.0
      %186 = vmatpush1.msra.mxu0 0.0
      %187 = vmatprep.subr.mxu0 0.0
      %188 = vmatpush1.msra.mxu0 0.0
      %189 = vmatprep.subr.mxu0 0.0
      %190 = vmatpush1.msra.mxu0 0.0
      %191 = vmatprep.mubr.f32.mxu0 0.0
      %192 = vmatmul.mubr.f32.gmra.mrb[0].mxu0 %v122
      %v193 = vpop.f32.mrb[0].mxu0
      %v194 = vadd.f32 0.0, %v193
      %v195 = vpop.f32.mrb[0].mxu0
      %196 = vmatprep.mubr.f32.mxu0 0.0
      %197 = vmatmul.mubr.f32.gmra.mrb[0].mxu0 %v125
      %v198 = vpop.f32.mrb[0].mxu0
      %v199 = vadd.f32 0.0, %v198
      %v200 = vpop.f32.mrb[0].mxu0
      %201 = vdwg.mxu0
      %v202 = vadd.f32 %v117, %v194
      %v203 = vadd.f32 %v118, %v199
      %vm204 = vcmask 261120
      %205 = vst.msk [vmem:[#allocation5] sm:$0xff] %vm204, %v202
      %206 = vst.msk [vmem:[#allocation5 + $0x8] sm:$0xff] %vm204, %v203
    $region17: #{tpu_custom_call.1} parent=1 // pred_fallthru
      _
    // Predicated region
    $region18: #{tpu_custom_call.1} parent=1 // pred_check
      _
    $region19: #{tpu_custom_call.1} parent=1 // pred_check_branch
      %208 = sbr.rel (0) target = $region21
    $region20: #{tpu_custom_call.1} parent=1 // pred_region
      %s210 = ssub.s32 256, 256
      %211 = vsyncadd [#allocation6], %s210
      %s212 = sshll.u32 [#allocation5], 4
      %s213 = int_to_ptr.vmem [resolvable:$true] %s212
      %218 = dma.vmem_to_hbm [thread:$0]  %s213, 256, %s4, [#allocation6], 128, 128, 8
    $region21: #{tpu_custom_call.1} parent=1 // pred_fallthru
      _
    // Predicated region
    $region22: #{tpu_custom_call.1} parent=1 // pred_check
      _
    $region23: #{tpu_custom_call.1} parent=1 // pred_check_branch
      %220 = sbr.rel (0) target = $region25
    $region24: #{tpu_custom_call.1} parent=1 // pred_region
      %221 = dma.done [#allocation6], 256
    $region25: #{tpu_custom_call.1} parent=1 // pred_fallthru
      _
    %222 = vsyncpa [#allocation6], 1

</llo_original>
